<compile_context>
chip_gen: v5e
topology: v5e:2x2
jax: 0.10.0
libtpu: 0.0.40
codegen_flags: <defaults>
</compile_context>

<pallas_src>
import jax
import jax.numpy as jnp
from jax.experimental import pallas as pl
from jax.experimental.pallas import tpu as pltpu


def _select_weights_kernel(g1_ref, g2_ref, bias_ref, w_ref):
    # g1_ref: (TB, L1, D), g2_ref: (TB, L2, D), bias_ref: (TB, L2) f32
    # w_ref : (TB, L2) f32
    g1 = g1_ref[...]
    g2 = g2_ref[...]

    # energy[b, q, k] = sum_d g1[b, q, d] * g2[b, k, d]
    # Contraction expressed directly (no .T / XLU transpose); MXU, f32 acc.
    energy = jax.lax.dot_general(
        g1, g2,
        dimension_numbers=(((2,), (2,)), ((0,), (0,))),
        preferred_element_type=jnp.float32)                  # (TB, L1, L2)

    # masked_fill(g_r2_mask == False, -1e10) as a precomputed additive bias.
    energy = energy + bias_ref[...][:, None, :]

    # Softmax over L2, but never materialize the normalized attention matrix:
    # weights_k = sum_q e_qk / s_q  with  r_q = 1/s_q  on the EUP.
    m = jnp.max(energy, axis=-1, keepdims=True)              # (TB, L1, 1)
    e = jnp.exp(energy - m)                                  # (TB, L1, L2)
    s = jnp.sum(e, axis=-1, keepdims=True)                   # (TB, L1, 1)
    r = pl.reciprocal(s, approx=True)                        # EUP slot (free)

    # weights = sum over L1 of the row-normalized scores -> lane-dense store.
    w_ref[...] = jnp.sum(r * e, axis=1)                      # (TB, L2)


def _pick_batch_tile(B, max_tb=8):
    # Block sublane dim must be a multiple of 8 or equal to the full extent.
    if B <= max_tb:
        return B
    if B % 8 == 0:
        return 8
    return B  # fall back to a single grid step


def select_attention_weights(g_r1, g_r2, g_r2_mask_2d):
    """Per-key attention weights [B, L2], computed in Pallas.

    Inputs are fed at their native dtype (bf16 or f32); accumulation is f32.
    """
    B, L1, D = g_r1.shape
    _, L2, _ = g_r2.shape
    TB = _pick_batch_tile(B)

    # Additive mask bias: 0 where valid, -1e10 where masked out.
    bias = jnp.where(g_r2_mask_2d, jnp.float32(0.0),
                     jnp.float32(-1.0e10))                    # (B, L2)

    weights = pl.pallas_call(
        _select_weights_kernel,
        out_shape=jax.ShapeDtypeStruct((B, L2), jnp.float32),
        grid_spec=pltpu.PrefetchScalarGridSpec(
            num_scalar_prefetch=0,
            grid=(B // TB,),
            in_specs=[
                pl.BlockSpec((TB, L1, D), lambda b: (b, 0, 0)),   # g_r1 tile
                pl.BlockSpec((TB, L2, D), lambda b: (b, 0, 0)),   # g_r2 tile
                pl.BlockSpec((TB, L2), lambda b: (b, 0)),         # mask bias
            ],
            out_specs=pl.BlockSpec((TB, L2), lambda b: (b, 0)),   # lane-dense
        ),
        compiler_params=pltpu.CompilerParams(
            dimension_semantics=("parallel",)),
    )(g_r1, g_r2, bias)
    return weights                                            # (B, L2)


class SelectAttentionPallas:
    """Pallas/JAX equivalent of SelectAttention(emb_dim, length, opt)."""

    def __init__(self, emb_dim, length, dropout=0.1, seed=0):
        self.emb_dim = emb_dim
        self.length = length
        # Deterministic init of nn.Linear(emb_dim, emb_dim) params (kept for
        # parity with __init__; they are never used in forward()).
        kw, kb = jax.random.split(jax.random.PRNGKey(seed))
        bound = 1.0 / (emb_dim ** 0.5)
        self.fc_w = jax.random.uniform(kw, (emb_dim, emb_dim), jnp.float32,
                                       -bound, bound)
        self.fc_b = jax.random.uniform(kb, (emb_dim,), jnp.float32,
                                       -bound, bound)
        # TODO(synk): self.fc and self.dropout are defined in the PyTorch
        # __init__ but never invoked in forward(); intentionally unused here.

    def __call__(self, g_r1, g_r2, g_r1_mask, g_r2_mask):
        B, L2, D = g_r2.shape
        g_r2_mask_2d = g_r2_mask.reshape(B, L2)               # == .squeeze()
        # Hot path in Pallas: energy matmul + masked softmax + column-sum.
        weights = select_attention_weights(g_r1, g_r2, g_r2_mask_2d)  # [B, L2]
        # torch.sort(descending=True)[..., :length]  ==  top_k indices.
        # TODO(synk): lax.top_k tie-breaking may differ from torch.sort's
        # stable descending order on exactly-tied weights.
        _, sort_idx = jax.lax.top_k(weights, self.length)             # [B, len]
        x_mask = jnp.take_along_axis(g_r2_mask_2d, sort_idx, axis=1)
        x_mask = x_mask[:, None, None, :]                             # [B,1,1,len]
        x = jnp.take_along_axis(g_r2, sort_idx[..., None], axis=1)    # [B,len,D]
        return x, x_mask


if __name__ == "__main__":
    B, L1, L2, D, LENGTH = 2, 8, 16, 32, 4

    key = jax.random.PRNGKey(0)
    k1, k2 = jax.random.split(key)
    g_r1 = jax.random.normal(k1, (B, L1, D), dtype=jnp.float32)
    g_r2 = jax.random.normal(k2, (B, L2, D), dtype=jnp.float32)

    # PyTorch-style attention masks [B, 1, 1, L], bool, True = valid token.
    valid2 = jnp.array([[True] * 12 + [False] * 4,
                        [True] * 16], dtype=bool)
    g_r2_mask = valid2.reshape(B, 1, 1, L2)
    g_r1_mask = jnp.ones((B, 1, 1, L1), dtype=bool)

    mod = SelectAttentionPallas(emb_dim=D, length=LENGTH)
    x, x_mask = mod(g_r1, g_r2, g_r1_mask, g_r2_mask)
    (x, x_mask) = jax.block_until_ready((x, x_mask))

    assert x.shape == (B, LENGTH, D), x.shape
    assert x_mask.shape == (B, 1, 1, LENGTH), x_mask.shape
    assert x_mask.dtype == jnp.bool_

    # Sanity vs a pure-JAX reference of the PyTorch math.
    energy_ref = jnp.einsum('bqd,bkd->bqk', g_r1, g_r2)
    energy_ref = jnp.where(valid2[:, None, :], energy_ref, -1.0e10)
    attn_ref = jax.nn.softmax(energy_ref, axis=-1)
    w_ref = jnp.sum(attn_ref, axis=1)
    w_ker = select_attention_weights(g_r1, g_r2, valid2)
    assert jnp.allclose(w_ker, w_ref, atol=2e-2, rtol=2e-2), (
        float(jnp.max(jnp.abs(w_ker - w_ref))))

    print("KERNEL_OK")
</pallas_src>

<mosaic_0001>
module attributes {stable_mosaic.version = 11 : i64} {
  func.func @_select_weights_kernel(%arg0: i32, %arg1: memref<2x8x32xf32, #tpu.memory_space<vmem>>, %arg2: memref<2x16x32xf32, #tpu.memory_space<vmem>>, %arg3: memref<2x16xf32, #tpu.memory_space<vmem>>, %arg4: memref<2x16xf32, #tpu.memory_space<vmem>>) attributes {dimension_semantics = [#tpu.dimension_semantics<parallel>], iteration_bounds = array<i64: 1>, scalar_prefetch = 0 : i64, scratch_operands = 0 : i64, tpu.core_type = #tpu.core_type<tc>, window_params = [{transform_indices = @transform_0, window_bounds = array<i64: 2, 8, 32>}, {transform_indices = @transform_1, window_bounds = array<i64: 2, 16, 32>}, {transform_indices = @transform_2, window_bounds = array<i64: 2, 16>}, {transform_indices = @transform_3, window_bounds = array<i64: 2, 16>}]} {
    %c0 = arith.constant 0 : index
    %c0_0 = arith.constant 0 : index
    %c0_1 = arith.constant 0 : index
    %0 = vector.load %arg1[%c0, %c0_0, %c0_1] : memref<2x8x32xf32, #tpu.memory_space<vmem>>, vector<2x8x32xf32>
    %c0_2 = arith.constant 0 : index
    %c0_3 = arith.constant 0 : index
    %c0_4 = arith.constant 0 : index
    %1 = vector.load %arg2[%c0_2, %c0_3, %c0_4] : memref<2x16x32xf32, #tpu.memory_space<vmem>>, vector<2x16x32xf32>
    %cst = arith.constant dense<0.000000e+00> : vector<2x8x16xf32>
    %2 = tpu.matmul %0, %1, %cst {dimension_numbers = #tpu.dot_dimension_numbers<[2], [2], [1], [1], [0, 0, 0, 1, 1, 1], [0], [0]>} : vector<2x8x32xf32>, vector<2x16x32xf32>, vector<2x8x16xf32> -> vector<2x8x16xf32>
    %c0_5 = arith.constant 0 : index
    %c0_6 = arith.constant 0 : index
    %3 = vector.load %arg3[%c0_5, %c0_6] : memref<2x16xf32, #tpu.memory_space<vmem>>, vector<2x16xf32>
    %4 = vector.shape_cast %3 : vector<2x16xf32> to vector<2x1x16xf32>
    %5 = vector.broadcast %4 : vector<2x1x16xf32> to vector<2x8x16xf32>
    %6 = arith.addf %2, %5 : vector<2x8x16xf32>
    %cst_7 = arith.constant dense<0xFF800000> : vector<2x8xf32>
    %7 = vector.multi_reduction <maximumf>, %6, %cst_7 [2] : vector<2x8x16xf32> to vector<2x8xf32>
    %8 = vector.shape_cast %7 : vector<2x8xf32> to vector<2x8x1xf32>
    %9 = vector.broadcast %8 : vector<2x8x1xf32> to vector<2x8x16xf32>
    %10 = arith.subf %6, %9 : vector<2x8x16xf32>
    %11 = math.exp %10 : vector<2x8x16xf32>
    %cst_8 = arith.constant dense<0.000000e+00> : vector<2x8xf32>
    %12 = vector.multi_reduction <add>, %11, %cst_8 [2] : vector<2x8x16xf32> to vector<2x8xf32>
    %13 = vector.shape_cast %12 : vector<2x8xf32> to vector<2x8x1xf32>
    %14 = tpu.reciprocal %13 {approx = true} : vector<2x8x1xf32> -> vector<2x8x1xf32>
    %15 = vector.broadcast %14 : vector<2x8x1xf32> to vector<2x8x16xf32>
    %16 = arith.mulf %15, %11 : vector<2x8x16xf32>
    %cst_9 = arith.constant dense<0.000000e+00> : vector<2x16xf32>
    %17 = vector.multi_reduction <add>, %16, %cst_9 [1] : vector<2x8x16xf32> to vector<2x16xf32>
    %c0_10 = arith.constant 0 : index
    %c0_11 = arith.constant 0 : index
    %18 = vector.load %arg4[%c0_10, %c0_11] : memref<2x16xf32, #tpu.memory_space<vmem>>, vector<2x16xf32>
    tpu.vector_store %arg4[%c0_10, %c0_11], %17 {strides = array<i32>} : memref<2x16xf32, #tpu.memory_space<vmem>>, vector<2x16xf32>,
    return
  }
  func.func @transform_0(%arg0: i32) -> (i32, i32, i32) {
    %c0_i32 = arith.constant 0 : i32
    %c0_i32_0 = arith.constant 0 : i32
    %c0_i32_1 = arith.constant 0 : i32
    return %arg0, %c0_i32, %c0_i32_0 : i32, i32, i32
  }
  func.func @transform_1(%arg0: i32) -> (i32, i32, i32) {
    %c0_i32 = arith.constant 0 : i32
    %c0_i32_0 = arith.constant 0 : i32
    %c0_i32_1 = arith.constant 0 : i32
    return %arg0, %c0_i32, %c0_i32_0 : i32, i32, i32
  }
  func.func @transform_2(%arg0: i32) -> (i32, i32) {
    %c0_i32 = arith.constant 0 : i32
    %c0_i32_0 = arith.constant 0 : i32
    return %arg0, %c0_i32 : i32, i32
  }
  func.func @transform_3(%arg0: i32) -> (i32, i32) {
    %c0_i32 = arith.constant 0 : i32
    %c0_i32_0 = arith.constant 0 : i32
    return %arg0, %c0_i32 : i32, i32
  }
}

</mosaic_0001>

<llo_original>
// kernel: tpu_custom_call.1
$region0: #{tpu_custom_call.1}
  #allocation0 [shape = 'u32[]', space=smem, size = 0x4, offset = 0x4, fixed_abs, tag = 'smem constant byte address 0x4 - core index']
  #allocation1 [shape = 'u32[72,128]{1,0:T(1,128)}', space=vmem, size = 0x9000, scoped, tag = 'internal scratch']
  %s0 = inlined_call_operand.hbm [shape: f32[2,8,32], index: 0, kind: input, shape index: {}]
  %s1 = inlined_call_operand.hbm [shape: f32[2,16,32], index: 1, kind: input, shape index: {}]
  %s2 = inlined_call_operand.hbm [shape: f32[2,16], index: 2, kind: input, shape index: {}]
  %s3 = inlined_call_operand.hbm [shape: f32[2,16], index: 3, kind: output, shape index: {}]
  %s4 = sld [smem:[#allocation0]]
  $region34: #{tpu_custom_call.1} parent=0
    _
  %s6 = ssub.s32 1, %s4
  %s7 = scalar_select 0, %s6, %s4
  $region1: #{tpu_custom_call.1} parent=0
    #allocation2 [shape = 'u8[8192]{0}', space=vmem, size = 0x2000, scoped, tag = 'input window, operand 0, single buffered']
    #allocation3 [shape = 's32[1]{0}', space=sflag, size = 0x4, scoped, tag = 'scoped memory for tpu_custom_call.1']
    #allocation4 [shape = 's32[1]{0}', space=sflag, size = 0x4, scoped, tag = 'scoped memory for tpu_custom_call.1']
    #allocation5 [shape = 'u8[16384]{0}', space=vmem, size = 0x4000, scoped, tag = 'input window, operand 1, single buffered']
    #allocation6 [shape = 's32[1]{0}', space=sflag, size = 0x4, scoped, tag = 'scoped memory for tpu_custom_call.1']
    #allocation7 [shape = 'u8[1024]{0}', space=vmem, size = 0x400, scoped, tag = 'input window, operand 2, single buffered']
    #allocation8 [shape = 'u8[1024]{0}', space=vmem, size = 0x400, scoped, tag = 'output window, operand 0, single buffered']
    %8 = vsyncpa [#allocation3], 0
    %9 = vsyncpa [#allocation6], 0
    %10 = vsyncpa [#allocation4], 0
    // Predicated region
    $region2: #{tpu_custom_call.1} parent=1 // pred_check
      _
    $region3: #{tpu_custom_call.1} parent=1 // pred_check_branch
      %12 = sbr.rel (0) target = $region5
    $region4: #{tpu_custom_call.1} parent=1 // pred_region
      %14 = vsyncadd [#allocation3], 0
      %s15 = sshll.u32 %s0, 4
      %s16 = int_to_ptr.hbm [resolvable:$true] %s15
      %s17 = sshll.u32 [#allocation2], 4
      %s18 = int_to_ptr.vmem [resolvable:$true] %s17
      %23 = dma.hbm_to_vmem [thread:$0]  %s16, 256, %s18, [#allocation3], 128, 128, 8
    $region5: #{tpu_custom_call.1} parent=1 // pred_fallthru
      _
    // Predicated region
    $region6: #{tpu_custom_call.1} parent=1 // pred_check
      _
    $region7: #{tpu_custom_call.1} parent=1 // pred_check_branch
      %25 = sbr.rel (0) target = $region9
    $region8: #{tpu_custom_call.1} parent=1 // pred_region
      %27 = vsyncadd [#allocation6], 0
      %s28 = sshll.u32 %s1, 4
      %s29 = int_to_ptr.hbm [resolvable:$true] %s28
      %s30 = sshll.u32 [#allocation5], 4
      %s31 = int_to_ptr.vmem [resolvable:$true] %s30
      %36 = dma.hbm_to_vmem [thread:$0]  %s29, 512, %s31, [#allocation6], 128, 128, 8
    $region9: #{tpu_custom_call.1} parent=1 // pred_fallthru
      _
    // Predicated region
    $region10: #{tpu_custom_call.1} parent=1 // pred_check
      _
    $region11: #{tpu_custom_call.1} parent=1 // pred_check_branch
      %38 = sbr.rel (0) target = $region13
    $region12: #{tpu_custom_call.1} parent=1 // pred_region
      %40 = vsyncadd [#allocation6], 0
      %s42 = sshll.u32 %s2, 4
      %s43 = int_to_ptr.hbm [resolvable:$true] %s42
      %s44 = sshll.u32 [#allocation7], 4
      %s45 = int_to_ptr.vmem [resolvable:$true] %s44
      %47 = dma.hbm_to_vmem [thread:$0]  %s43, 32, %s45, [#allocation6]
    $region13: #{tpu_custom_call.1} parent=1 // pred_fallthru
      _
    // Predicated region
    $region14: #{tpu_custom_call.1} parent=1 // pred_check
      _
    $region15: #{tpu_custom_call.1} parent=1 // pred_check_branch
      %49 = sbr.rel (0) target = $region17
    $region16: #{tpu_custom_call.1} parent=1 // pred_region
      %51 = dma.done [#allocation3], 256
    $region17: #{tpu_custom_call.1} parent=1 // pred_fallthru
      _
    // Predicated region
    $region18: #{tpu_custom_call.1} parent=1 // pred_check
      _
    $region19: #{tpu_custom_call.1} parent=1 // pred_check_branch
      %53 = sbr.rel (0) target = $region21
    $region20: #{tpu_custom_call.1} parent=1 // pred_region
      %55 = dma.done [#allocation6], 512
    $region21: #{tpu_custom_call.1} parent=1 // pred_fallthru
      _
    // Predicated region
    $region22: #{tpu_custom_call.1} parent=1 // pred_check
      _
    $region23: #{tpu_custom_call.1} parent=1 // pred_check_branch
      %57 = sbr.rel (0) target = $region25
    $region24: #{tpu_custom_call.1} parent=1 // pred_region
      %59 = dma.done [#allocation6], 32
    $region25: #{tpu_custom_call.1} parent=1 // pred_fallthru
      _
    %v60 = vld [vmem:[#allocation2] sm:$0xff]
    %v61 = vld [vmem:[#allocation2 + $0x8] sm:$0xff]
    %v62 = vld [vmem:[#allocation5] sm:$0xff]
    %v63 = vld [vmem:[#allocation5 + $0x8] sm:$0xff]
    %v64 = vld [vmem:[#allocation5 + $0x10] sm:$0xff]
    %v65 = vld [vmem:[#allocation5 + $0x18] sm:$0xff]
    %v66 = vld [vmem:[#allocation7] sm:$0x3]
    %v68 = vrot.slane %v66, 1
    %v69 = vperm.slane %v66, 0
    %v70 = vperm.slane %v68, 0
    %vm73 = vcmask 261120
    %v75 = vsel %vm73, %v60, 0
    %v78 = vsel %vm73, %v62, 0
    %v81 = vsel %vm73, %v63, 0
    %83 = vmatpush.xpose.msra.mxu0 0.0
    %84 = vmatpush.xpose.msra.mxu0 0.0
    %85 = vmatpush.xpose.msra.mxu0 0.0
    %86 = vmatpush.xpose.msra.mxu0 0.0
    %87 = vmatpush.xpose.msra.mxu0 0.0
    %88 = vmatpush.xpose.msra.mxu0 0.0
    %89 = vmatpush.xpose.msra.mxu0 0.0
    %90 = vmatpush.xpose.msra.mxu0 0.0
    %91 = vmatpush.xpose.msra.mxu0 0.0
    %92 = vmatpush.xpose.msra.mxu0 0.0
    %93 = vmatpush.xpose.msra.mxu0 0.0
    %94 = vmatpush.xpose.msra.mxu0 0.0
    %95 = vmatpush.xpose.msra.mxu0 0.0
    %96 = vmatpush.xpose.msra.mxu0 0.0
    %97 = vmatpush.xpose.msra.mxu0 %v81
    %98 = vmatpush.xpose.msra.mxu0 %v78
    %99 = vmatmul.f32.gmra.mxu0 %v75
    %v100 = vpop.f32.mrf.mxu0
    %v101 = vadd.f32 %v69, %v100
    %102 = vdwg.mxu0
    %v104 = vsel %vm73, %v61, 0
    %v107 = vsel %vm73, %v64, 0
    %v110 = vsel %vm73, %v65, 0
    %112 = vmatpush.xpose.msra.mxu0 0.0
    %113 = vmatpush.xpose.msra.mxu0 0.0
    %114 = vmatpush.xpose.msra.mxu0 0.0
    %115 = vmatpush.xpose.msra.mxu0 0.0
    %116 = vmatpush.xpose.msra.mxu0 0.0
    %117 = vmatpush.xpose.msra.mxu0 0.0
    %118 = vmatpush.xpose.msra.mxu0 0.0
    %119 = vmatpush.xpose.msra.mxu0 0.0
    %120 = vmatpush.xpose.msra.mxu0 0.0
    %121 = vmatpush.xpose.msra.mxu0 0.0
    %122 = vmatpush.xpose.msra.mxu0 0.0
    %123 = vmatpush.xpose.msra.mxu0 0.0
    %124 = vmatpush.xpose.msra.mxu0 0.0
    %125 = vmatpush.xpose.msra.mxu0 0.0
    %126 = vmatpush.xpose.msra.mxu0 %v110
    %127 = vmatpush.xpose.msra.mxu0 %v107
    %128 = vmatmul.f32.gmra.mxu0 %v104
    %v129 = vpop.f32.mrf.mxu0
    %v130 = vadd.f32 %v70, %v129
    %131 = vdwg.mxu0
    %vm132 = vcmask 130048
    %v133 = vsel %vm132, %v101, -inf
    %134 = vmax.xlane.f32.xlu0 %v133
    %v135 = vpop.xlane.xlu0 %134
    %v136 = vsel %vm132, %v130, -inf
    %137 = vmax.xlane.f32.xlu0 %v136
    %v138 = vpop.xlane.xlu0 %137
    %v139 = vsub.f32 %v101, %v135
    %v140 = vsub.f32 %v130, %v138
    %v141 = vmul.f32 %v139, 1.442695
    %v142 = vpow.pop %v141
    %v143 = vmul.f32 %v140, 1.442695
    %v144 = vpow.pop %v143
    %v145 = vsel %vm132, %v142, 0.0
    %146 = vadd.xlane.f32.xlu0 %v145
    %v147 = vpop.xlane.xlu0 %146
    %v148 = vsel %vm132, %v144, 0.0
    %149 = vadd.xlane.f32.xlu0 %v148
    %v150 = vpop.xlane.xlu0 %149
    %v151 = vrcp.pop %v147
    %v152 = vrcp.pop %v150
    %v153 = vmul.f32 %v151, %v142
    %v154 = vmul.f32 %v152, %v144
    %v155 = vsel %vm132, %v153, 0.0
    %v156 = vrot.slane %v155, 4
    %v157 = vadd.f32 %v155, %v156
    %v158 = vrot.slane %v157, 2
    %v159 = vadd.f32 %v157, %v158
    %v160 = vrot.slane %v159, 1
    %v161 = vadd.f32 %v159, %v160
    %v162 = vsel %vm132, %v154, 0.0
    %v163 = vrot.slane %v162, 4
    %v164 = vadd.f32 %v162, %v163
    %v165 = vrot.slane %v164, 2
    %v166 = vadd.f32 %v164, %v165
    %v167 = vrot.slane %v166, 1
    %v168 = vadd.f32 %v166, %v167
    %vm171 = vcmask 1041409
    %v172 = vsel %vm171, %v168, %v161
    %vm174 = vcmask 123904
    %175 = vst.msk [vmem:[#allocation8] sm:$0x3] %vm174, %v172
    // Predicated region
    $region26: #{tpu_custom_call.1} parent=1 // pred_check
      _
    $region27: #{tpu_custom_call.1} parent=1 // pred_check_branch
      %177 = sbr.rel (0) target = $region29
    $region28: #{tpu_custom_call.1} parent=1 // pred_region
      %179 = vsyncadd [#allocation4], 0
      %s181 = sshll.u32 [#allocation8], 4
      %s182 = int_to_ptr.vmem [resolvable:$true] %s181
      %s183 = sshll.u32 %s3, 4
      %s184 = int_to_ptr.hbm [resolvable:$true] %s183
      %186 = dma.vmem_to_hbm [thread:$0]  %s182, 32, %s184, [#allocation4]
    $region29: #{tpu_custom_call.1} parent=1 // pred_fallthru
      _
    // Predicated region
    $region30: #{tpu_custom_call.1} parent=1 // pred_check
      _
    $region31: #{tpu_custom_call.1} parent=1 // pred_check_branch
      %188 = sbr.rel (0) target = $region33
    $region32: #{tpu_custom_call.1} parent=1 // pred_region
      %190 = dma.done [#allocation4], 32
    $region33: #{tpu_custom_call.1} parent=1 // pred_fallthru
      _
    %191 = vsyncpa [#allocation3], 1
    %192 = vsyncpa [#allocation6], 1
    %193 = vsyncpa [#allocation4], 1

</llo_original>
